<compile_context>
chip_gen: v7x
topology: tpu7x:2x2x1
jax: 0.10.0
libtpu: 0.0.40
codegen_flags: <defaults>
</compile_context>

<pallas_src>
import math
import functools

import jax
import jax.numpy as jnp
from jax.experimental import pallas as pl
from jax.experimental.pallas import tpu as pltpu


def _round_up(a, b):
    return ((a + b - 1) // b) * b


def _pos_enc_kernel(x_ref, o_ref, *, omega, include_input, reseed_period):
    # x_ref: (TM, 128) tile of flattened input, in the original dtype.
    # o_ref: (dims, TM, 128) channel-major tile -> every store is lane-dense.
    x_in = x_ref[...]
    x = x_in.astype(jnp.float32)        # widen on the VPU, not in the wrapper
    num_oct = len(omega)
    offset = 0
    if include_input:
        o_ref[0] = x_in.astype(o_ref.dtype)
        offset = 1

    s = c = None
    for i, w in enumerate(omega):
        if i % reseed_period == 0:
            # Exact seed (and periodic re-seed to bound recurrence error).
            ang = x * w
            s = jnp.sin(ang)
            c = jnp.cos(ang)
        else:
            # omega is an exact power-of-two ladder: angle_i = 2 * angle_{i-1}
            #   sin(2a) = 2 sin(a) cos(a),  cos(2a) = 1 - 2 sin(a)^2
            # ~5 VALU ops per octave instead of ~40+ for polynomial sin/cos.
            s2 = s + s
            s, c = s2 * c, 1.0 - s2 * s
        o_ref[offset + i] = s.astype(o_ref.dtype)
        o_ref[offset + num_oct + i] = c.astype(o_ref.dtype)


class PositionalEncoderPallas:
    """JAX/Pallas port of PositionalEncoder (deterministic buffer, no ckpt)."""

    LANE = 128
    MAX_TM = 1024        # big tile: amortizes ~0.35us/step, ~10-16 MiB working set
    RESEED_PERIOD = 4    # exact sin/cos every 4 octaves keeps error << 1e-5

    def __init__(self, num_pos_encoding_octaves, euclidean_space_scale,
                 include_input):
        assert isinstance(num_pos_encoding_octaves, int) and num_pos_encoding_octaves > 0
        assert isinstance(euclidean_space_scale, (int, float)) and euclidean_space_scale > 0.0
        assert isinstance(include_input, bool)
        self.include_input = include_input
        self.num_octaves = num_pos_encoding_octaves
        self.dims = 2 * num_pos_encoding_octaves + (1 if include_input else 0)
        scale = 1.0 / euclidean_space_scale
        # deterministic "buffer": omega_k = 2**k * pi / euclidean_space_scale
        self.omega = tuple(
            float((2.0 ** k) * math.pi * scale)
            for k in range(num_pos_encoding_octaves)
        )

    def __call__(self, x, *, channel_major=False):
        orig_shape = x.shape
        if jnp.issubdtype(x.dtype, jnp.floating):
            work_dtype = x.dtype
        else:
            # non-float inputs: compute and return in f32 (matches torch promotion)
            x = x.astype(jnp.float32)
            work_dtype = jnp.float32

        n = int(math.prod(orig_shape)) if len(orig_shape) > 0 else 1
        if n == 0:
            out = jnp.zeros((self.dims, *orig_shape), dtype=work_dtype) if channel_major \
                else jnp.zeros((*orig_shape, self.dims), dtype=work_dtype)
            return out

        itemsize = jnp.dtype(work_dtype).itemsize
        sublane = 8 if itemsize >= 4 else 16   # min legal sublane tile per dtype

        xf = x.reshape(-1)
        rows_exact = pl.cdiv(n, self.LANE)

        if rows_exact <= 2 * sublane:
            # Tiny input: one small, sublane-aligned step.
            tm = _round_up(rows_exact, sublane)
            rows = tm
        else:
            # >=2 (even) grid steps so both v7x TensorCores get work; cap at MAX_TM.
            target_steps = max(2, pl.cdiv(rows_exact, self.MAX_TM))
            if target_steps % 2:
                target_steps += 1
            tm = min(self.MAX_TM,
                     _round_up(pl.cdiv(rows_exact, target_steps), sublane))
            rows = rows_exact            # let Pallas mask the partial last block
        grid_steps = pl.cdiv(rows, tm)

        n_pad = rows * self.LANE
        if n_pad != n:
            # Lane-aligned inputs skip this entirely; worst case pads < tm*128 elems.
            xf = jnp.pad(xf, (0, n_pad - n))
        x2d = xf.reshape(rows, self.LANE)

        kernel = functools.partial(
            _pos_enc_kernel,
            omega=self.omega,
            include_input=self.include_input,
            reseed_period=self.RESEED_PERIOD,
        )

        in_tile_bytes = tm * self.LANE * itemsize
        out_tile_bytes = self.dims * tm * self.LANE * itemsize
        f32_temp_bytes = 4 * tm * self.LANE * 4        # x, s, c (+ slack) in f32
        vmem_limit = 2 * (in_tile_bytes + out_tile_bytes) + f32_temp_bytes + (4 << 20)
        vmem_limit = min(max(vmem_limit, 32 << 20), 48 << 20)   # v7x headroom

        out = pl.pallas_call(
            kernel,
            out_shape=jax.ShapeDtypeStruct((self.dims, rows, self.LANE),
                                           work_dtype),
            grid_spec=pltpu.PrefetchScalarGridSpec(
                num_scalar_prefetch=0,
                grid=(grid_steps,),
                in_specs=[
                    pl.BlockSpec((tm, self.LANE), lambda i: (i, 0)),
                ],
                out_specs=pl.BlockSpec(
                    (self.dims, tm, self.LANE), lambda i: (0, i, 0)
                ),
            ),
            compiler_params=pltpu.CompilerParams(
                dimension_semantics=("parallel",),
                vmem_limit_bytes=int(vmem_limit),
            ),
        )(x2d)

        out = out.reshape(self.dims, n_pad)
        if n_pad != n:
            out = out[:, :n]
        if channel_major:
            # Lane-friendly layout, no extra HBM pass (downstream opt-in).
            return out.reshape(self.dims, *orig_shape)
        # TODO(synk): if a downstream consumer can accept channel-major output,
        # use channel_major=True and drop this transpose (a full extra HBM pass
        # with a minor dim of only `dims`).
        return out.T.reshape(*orig_shape, self.dims)


def _reference(x, omega, include_input):
    omega = jnp.asarray(omega, dtype=jnp.float32)
    xr = x.astype(jnp.float32)[..., None]
    scaled = xr * omega
    enc = jnp.concatenate([jnp.sin(scaled), jnp.cos(scaled)], axis=-1)
    if include_input:
        enc = jnp.concatenate([xr, enc], axis=-1)
    return enc


if __name__ == "__main__":
    num_octaves = 4
    euclidean_space_scale = 2.0
    include_input = True

    enc = PositionalEncoderPallas(num_octaves, euclidean_space_scale,
                                  include_input)

    key = jax.random.PRNGKey(0)
    x = jax.random.uniform(key, (2, 4, 16, 16), dtype=jnp.float32,
                           minval=-1.0, maxval=1.0)

    out = enc(x)
    out = jax.block_until_ready(out)

    expected_shape = (*x.shape, enc.dims)
    assert out.shape == expected_shape, (out.shape, expected_shape)
    assert out.dtype == x.dtype, (out.dtype, x.dtype)

    ref = _reference(x, enc.omega, include_input)
    # Slightly relaxed tolerance: the double-angle recurrence trades ~few-ulp
    # extra error per octave for a large VALU saving.
    assert jnp.allclose(out, ref, atol=2e-5, rtol=2e-5), float(
        jnp.max(jnp.abs(out - ref))
    )

    # Larger, oddly-sized input: exercises lane padding + partial boundary block
    # + multi-step (>=2, even) grid.
    key2 = jax.random.PRNGKey(0)
    x_big = jax.random.uniform(key2, (3, 7, 333), dtype=jnp.float32,
                               minval=-2.0, maxval=2.0)
    out_big = jax.block_until_ready(enc(x_big))
    ref_big = _reference(x_big, enc.omega, include_input)
    assert out_big.shape == (*x_big.shape, enc.dims)
    assert jnp.allclose(out_big, ref_big, atol=2e-5, rtol=2e-5), float(
        jnp.max(jnp.abs(out_big - ref_big))
    )

    # Channel-major fast path (no transpose) must hold the same values.
    out_cm = jax.block_until_ready(enc(x, channel_major=True))
    assert out_cm.shape == (enc.dims, *x.shape)
    assert jnp.allclose(jnp.moveaxis(out_cm, 0, -1), ref, atol=2e-5, rtol=2e-5)

    print("KERNEL_OK")
</pallas_src>

<mosaic_0001>
module attributes {stable_mosaic.version = 11 : i64} {
  func.func @_pos_enc_kernel(%arg0: i32, %arg1: memref<16x128xf32, #tpu.memory_space<vmem>>, %arg2: memref<9x16x128xf32, #tpu.memory_space<vmem>>) attributes {dimension_semantics = [#tpu.dimension_semantics<parallel>], iteration_bounds = array<i64: 1>, scalar_prefetch = 0 : i64, scratch_operands = 0 : i64, tpu.core_type = #tpu.core_type<tc>, window_params = [{transform_indices = @transform_0, window_bounds = array<i64: 16, 128>}, {transform_indices = @transform_1, window_bounds = array<i64: 9, 16, 128>}]} {
    %c0 = arith.constant 0 : index
    %c0_0 = arith.constant 0 : index
    %0 = vector.load %arg1[%c0, %c0_0] : memref<16x128xf32, #tpu.memory_space<vmem>>, vector<16x128xf32>
    %c0_1 = arith.constant 0 : index
    %c0_2 = arith.constant 0 : index
    %c0_3 = arith.constant 0 : index
    %1 = vector.load %arg2[%c0_1, %c0_2, %c0_3] : memref<9x16x128xf32, #tpu.memory_space<vmem>>, vector<1x16x128xf32>
    %2 = vector.shape_cast %1 : vector<1x16x128xf32> to vector<16x128xf32>
    %3 = vector.shape_cast %0 : vector<16x128xf32> to vector<1x16x128xf32>
    tpu.vector_store %arg2[%c0_1, %c0_2, %c0_3], %3 {strides = array<i32>} : memref<9x16x128xf32, #tpu.memory_space<vmem>>, vector<1x16x128xf32>,
    %cst = arith.constant 1.57079637 : f32
    %4 = vector.broadcast %cst : f32 to vector<16x128xf32>
    %5 = arith.mulf %0, %4 : vector<16x128xf32>
    %6 = math.sin %5 : vector<16x128xf32>
    %7 = math.cos %5 : vector<16x128xf32>
    %c1 = arith.constant 1 : index
    %c0_4 = arith.constant 0 : index
    %c0_5 = arith.constant 0 : index
    %8 = vector.load %arg2[%c1, %c0_4, %c0_5] : memref<9x16x128xf32, #tpu.memory_space<vmem>>, vector<1x16x128xf32>
    %9 = vector.shape_cast %8 : vector<1x16x128xf32> to vector<16x128xf32>
    %10 = vector.shape_cast %6 : vector<16x128xf32> to vector<1x16x128xf32>
    tpu.vector_store %arg2[%c1, %c0_4, %c0_5], %10 {strides = array<i32>} : memref<9x16x128xf32, #tpu.memory_space<vmem>>, vector<1x16x128xf32>,
    %c5 = arith.constant 5 : index
    %c0_6 = arith.constant 0 : index
    %c0_7 = arith.constant 0 : index
    %11 = vector.load %arg2[%c5, %c0_6, %c0_7] : memref<9x16x128xf32, #tpu.memory_space<vmem>>, vector<1x16x128xf32>
    %12 = vector.shape_cast %11 : vector<1x16x128xf32> to vector<16x128xf32>
    %13 = vector.shape_cast %7 : vector<16x128xf32> to vector<1x16x128xf32>
    tpu.vector_store %arg2[%c5, %c0_6, %c0_7], %13 {strides = array<i32>} : memref<9x16x128xf32, #tpu.memory_space<vmem>>, vector<1x16x128xf32>,
    %14 = arith.addf %6, %6 : vector<16x128xf32>
    %15 = arith.mulf %14, %7 : vector<16x128xf32>
    %16 = arith.mulf %14, %6 : vector<16x128xf32>
    %cst_8 = arith.constant 1.000000e+00 : f32
    %17 = vector.broadcast %cst_8 : f32 to vector<16x128xf32>
    %18 = arith.subf %17, %16 : vector<16x128xf32>
    %c2 = arith.constant 2 : index
    %c0_9 = arith.constant 0 : index
    %c0_10 = arith.constant 0 : index
    %19 = vector.load %arg2[%c2, %c0_9, %c0_10] : memref<9x16x128xf32, #tpu.memory_space<vmem>>, vector<1x16x128xf32>
    %20 = vector.shape_cast %19 : vector<1x16x128xf32> to vector<16x128xf32>
    %21 = vector.shape_cast %15 : vector<16x128xf32> to vector<1x16x128xf32>
    tpu.vector_store %arg2[%c2, %c0_9, %c0_10], %21 {strides = array<i32>} : memref<9x16x128xf32, #tpu.memory_space<vmem>>, vector<1x16x128xf32>,
    %c6 = arith.constant 6 : index
    %c0_11 = arith.constant 0 : index
    %c0_12 = arith.constant 0 : index
    %22 = vector.load %arg2[%c6, %c0_11, %c0_12] : memref<9x16x128xf32, #tpu.memory_space<vmem>>, vector<1x16x128xf32>
    %23 = vector.shape_cast %22 : vector<1x16x128xf32> to vector<16x128xf32>
    %24 = vector.shape_cast %18 : vector<16x128xf32> to vector<1x16x128xf32>
    tpu.vector_store %arg2[%c6, %c0_11, %c0_12], %24 {strides = array<i32>} : memref<9x16x128xf32, #tpu.memory_space<vmem>>, vector<1x16x128xf32>,
    %25 = arith.addf %15, %15 : vector<16x128xf32>
    %26 = arith.mulf %25, %18 : vector<16x128xf32>
    %27 = arith.mulf %25, %15 : vector<16x128xf32>
    %cst_13 = arith.constant 1.000000e+00 : f32
    %28 = vector.broadcast %cst_13 : f32 to vector<16x128xf32>
    %29 = arith.subf %28, %27 : vector<16x128xf32>
    %c3 = arith.constant 3 : index
    %c0_14 = arith.constant 0 : index
    %c0_15 = arith.constant 0 : index
    %30 = vector.load %arg2[%c3, %c0_14, %c0_15] : memref<9x16x128xf32, #tpu.memory_space<vmem>>, vector<1x16x128xf32>
    %31 = vector.shape_cast %30 : vector<1x16x128xf32> to vector<16x128xf32>
    %32 = vector.shape_cast %26 : vector<16x128xf32> to vector<1x16x128xf32>
    tpu.vector_store %arg2[%c3, %c0_14, %c0_15], %32 {strides = array<i32>} : memref<9x16x128xf32, #tpu.memory_space<vmem>>, vector<1x16x128xf32>,
    %c7 = arith.constant 7 : index
    %c0_16 = arith.constant 0 : index
    %c0_17 = arith.constant 0 : index
    %33 = vector.load %arg2[%c7, %c0_16, %c0_17] : memref<9x16x128xf32, #tpu.memory_space<vmem>>, vector<1x16x128xf32>
    %34 = vector.shape_cast %33 : vector<1x16x128xf32> to vector<16x128xf32>
    %35 = vector.shape_cast %29 : vector<16x128xf32> to vector<1x16x128xf32>
    tpu.vector_store %arg2[%c7, %c0_16, %c0_17], %35 {strides = array<i32>} : memref<9x16x128xf32, #tpu.memory_space<vmem>>, vector<1x16x128xf32>,
    %36 = arith.addf %26, %26 : vector<16x128xf32>
    %37 = arith.mulf %36, %29 : vector<16x128xf32>
    %38 = arith.mulf %36, %26 : vector<16x128xf32>
    %cst_18 = arith.constant 1.000000e+00 : f32
    %39 = vector.broadcast %cst_18 : f32 to vector<16x128xf32>
    %40 = arith.subf %39, %38 : vector<16x128xf32>
    %c4 = arith.constant 4 : index
    %c0_19 = arith.constant 0 : index
    %c0_20 = arith.constant 0 : index
    %41 = vector.load %arg2[%c4, %c0_19, %c0_20] : memref<9x16x128xf32, #tpu.memory_space<vmem>>, vector<1x16x128xf32>
    %42 = vector.shape_cast %41 : vector<1x16x128xf32> to vector<16x128xf32>
    %43 = vector.shape_cast %37 : vector<16x128xf32> to vector<1x16x128xf32>
    tpu.vector_store %arg2[%c4, %c0_19, %c0_20], %43 {strides = array<i32>} : memref<9x16x128xf32, #tpu.memory_space<vmem>>, vector<1x16x128xf32>,
    %c8 = arith.constant 8 : index
    %c0_21 = arith.constant 0 : index
    %c0_22 = arith.constant 0 : index
    %44 = vector.load %arg2[%c8, %c0_21, %c0_22] : memref<9x16x128xf32, #tpu.memory_space<vmem>>, vector<1x16x128xf32>
    %45 = vector.shape_cast %44 : vector<1x16x128xf32> to vector<16x128xf32>
    %46 = vector.shape_cast %40 : vector<16x128xf32> to vector<1x16x128xf32>
    tpu.vector_store %arg2[%c8, %c0_21, %c0_22], %46 {strides = array<i32>} : memref<9x16x128xf32, #tpu.memory_space<vmem>>, vector<1x16x128xf32>,
    return
  }
  func.func @transform_0(%arg0: i32) -> (i32, i32) {
    %c0_i32 = arith.constant 0 : i32
    %c0_i32_0 = arith.constant 0 : i32
    return %arg0, %c0_i32 : i32, i32
  }
  func.func @transform_1(%arg0: i32) -> (i32, i32, i32) {
    %c0_i32 = arith.constant 0 : i32
    %c0_i32_0 = arith.constant 0 : i32
    %c0_i32_1 = arith.constant 0 : i32
    return %c0_i32, %arg0, %c0_i32_0 : i32, i32, i32
  }
}

</mosaic_0001>

<llo_original>
// kernel: tpu_custom_call.1
$region0: #{tpu_custom_call.1}
  #allocation0 [shape = 'u32[]', space=smem, size = 0x4, offset = 0x4, fixed_abs, tag = 'smem constant byte address 0x4 - core index']
  #allocation1 [shape = 'u32[144,128]{1,0:T(1,128)}', space=vmem, size = 0x12000, scoped, tag = 'internal scratch']
  %s0 = inlined_call_operand.hbm [shape: f32[16,128], index: 0, kind: input, shape index: {}]
  %s1 = inlined_call_operand.hbm [shape: f32[9,16,128], index: 1, kind: output, shape index: {}]
  %s2 = sld [smem:[#allocation0]]
  $region18: #{tpu_custom_call.1} parent=0
    _
  %s4 = ssub.s32 1, %s2
  %s5 = scalar_select 0, %s4, %s2
  $region1: #{tpu_custom_call.1} parent=0
    #allocation2 [shape = 'u8[8192]{0}', space=vmem, size = 0x2000, scoped, tag = 'input window, operand 0, single buffered']
    #allocation3 [shape = 's32[1]{0}', space=sflag, size = 0x4, scoped, tag = 'scoped memory for tpu_custom_call.1']
    #allocation4 [shape = 's32[1]{0}', space=sflag, size = 0x4, scoped, tag = 'scoped memory for tpu_custom_call.1']
    #allocation5 [shape = 'u8[73728]{0}', space=vmem, size = 0x12000, scoped, tag = 'output window, operand 0, single buffered']
    %6 = vsyncpa [#allocation3], 0
    %7 = vsyncpa [#allocation4], 0
    // Predicated region
    $region2: #{tpu_custom_call.1} parent=1 // pred_check
      _
    $region3: #{tpu_custom_call.1} parent=1 // pred_check_branch
      %9 = sbr.rel (0) target = $region5
    $region4: #{tpu_custom_call.1} parent=1 // pred_region
      %s11 = ssub.s32 256, 256
      %12 = vsyncadd [#allocation3], %s11
      %s13 = sshll.u32 [#allocation2], 4
      %s14 = int_to_ptr.vmem [resolvable:$true] %s13
      %19 = dma.hbm_to_vmem [thread:$0]  %s0, 256, %s14, [#allocation3], 128, 128, 8
    $region5: #{tpu_custom_call.1} parent=1 // pred_fallthru
      _
    // Predicated region
    $region6: #{tpu_custom_call.1} parent=1 // pred_check
      _
    $region7: #{tpu_custom_call.1} parent=1 // pred_check_branch
      %21 = sbr.rel (0) target = $region9
    $region8: #{tpu_custom_call.1} parent=1 // pred_region
      %22 = dma.done [#allocation3], 256
    $region9: #{tpu_custom_call.1} parent=1 // pred_fallthru
      _
    %v23 = vld [vmem:[#allocation2] sm:$0xff]
    %v24 = vld [vmem:[#allocation2 + $0x8] sm:$0xff]
    %25 = vst [vmem:[#allocation5] sm:$0xff] %v23
    %26 = vst [vmem:[#allocation5 + $0x8] sm:$0xff] %v24
    %v27 = vmul.f32 %v23, 1.5707964
    %v28 = vmul.f32 %v24, 1.5707964
    %v29 = vand.u32 2147483647, %v27
    %vm30 = vcmp.le.f32.partialorder %v29, 0.7853982
    %vm31 = vcmp.lt.s32.totalorder %v27, 0
    %v32 = vand.u32 %v27, 2139095040
    %v33 = vshrl.u32 %v32, 23
    %v34 = vsub.s32 %v33, 127
    %v35 = vand.u32 2147483647, %v27
    %v36 = vand.u32 %v35, 8388607
    %v37 = vor.u32 %v36, 8388608
    %v38 = vsub.s32 0, %v37
    %v39 = vadd.s32 %v34, 1
    %vm40 = vcmp.gt.s32.totalorder %v39, 0
    %v41 = vsel %vm40, %v39, 0
    %v42 = vshrl.u32 %v41, 5
    %v43 = vand.u32 %v41, 31
    %v44 = vsub.s32 32, %v43
    %v45 = vshrl.u32 683565275, %v44
    %v46 = vshll.u32 683565275, %v43
    %v47 = vshrl.u32 2475754826, %v44
    %v48 = vor.u32 %v46, %v47
    %v49 = vshll.u32 2475754826, %v43
    %v50 = vshrl.u32 2131351028, %v44
    %v51 = vor.u32 %v49, %v50
    %v52 = vshll.u32 2131351028, %v43
    %v53 = vshrl.u32 2102212464, %v44
    %v54 = vor.u32 %v52, %v53
    %v55 = vshll.u32 2102212464, %v43
    %v56 = vshrl.u32 920167782, %v44
    %v57 = vor.u32 %v55, %v56
    %v58 = vshll.u32 920167782, %v43
    %v59 = vshrl.u32 1326507024, %v44
    %v60 = vor.u32 %v58, %v59
    %vm61 = vcmp.lt.s32.totalorder %v42, 1
    %vm62 = vcmp.lt.s32.totalorder %v42, 2
    %vm63 = vcmp.lt.s32.totalorder %v42, 3
    %vm64 = vcmp.lt.s32.totalorder %v42, 4
    %v65 = vsel %vm61, %v45, %v48
    %v66 = vsel %vm64, %v54, 2102212464
    %v67 = vsel %vm63, %v51, %v66
    %v68 = vsel %vm62, %v65, %v67
    %v69 = vsel %vm61, %v48, %v51
    %v70 = vsel %vm64, %v57, 920167782
    %v71 = vsel %vm63, %v54, %v70
    %v72 = vsel %vm62, %v69, %v71
    %v73 = vsel %vm61, %v51, %v54
    %v74 = vsel %vm64, %v60, 1326507024
    %v75 = vsel %vm63, %v57, %v74
    %v76 = vsel %vm62, %v73, %v75
    %v77 = vshll.u32 %v37, 8
    %v78 = vmul.u32.u64.compose %v77, %v76
    %v79 = vextract.low.u32 %v78
    %v80 = vextract.high.u32 %v78
    %v81 = vmul.u32.u64.compose %v77, %v72
    %v82 = vextract.low.u32 %v81
    %v83 = vextract.high.u32 %v81
    %v84 = vmul.u32 %v77, %v68
    %v85 = vadd.s32 %v80, %v82
    %vm86 = vc.u32 %v80, %v82
    %v87 = vadd.s32 %v83, 1
    %v88 = vsel %vm86, %v87, %v83
    %v89 = vadd.s32 %v84, %v88
    %v90 = vadd.s32 %v89, 536870912
    %v91 = vshrl.u32 %v90, 30
    %v92 = vshll.u32 %v91, 30
    %v93 = vsub.s32 %v89, %v92
    %vm94 = vcmp.lt.s32.totalorder %v93, 0
    %v95 = vsub.s32 0, %v93
    %v96 = vsel %vm94, %v95, %v93
    %v97 = vclz %v96
    %v98 = vsub.s32 %v97, 2
    %vm99 = vcmp.gt.s32.totalorder 0, %v98
    %v100 = vsel %vm99, 0, %v98
    %v101 = vsub.s32 32, %v100
    %v102 = vshll.u32 %v93, %v100
    %v103 = vshrl.u32 %v85, %v101
    %v104 = vor.u32 %v102, %v103
    %v105 = vsub.s32 4294967266, %v100
    %v106 = vadd.s32 %v105, 127
    %v107 = vshll.u32 %v106, 23
    %v108 = vor.u32 4788187, %v107
    %v109 = vand.u32 2147483647, %v108
    %v111 = vcvt.s32.f32 %v104
    %v112 = vmul.f32 %v111, %v109
    %v113 = vxor.u32 %v112, 2147483648
    %v114 = vsel %vm31, %v113, %v112
    %v115 = vsub.s32 4, %v91
    %v116 = vsel %vm31, %v115, %v91
    %v117 = vsel %vm30, %v27, %v114
    %v118 = vsel %vm30, 0, %v116
    %v119 = vcosq.f32.pop %v117
    %v120 = vsinq.f32.pop %v117
    %vm121 = vweird.f32 %v27
    %v122 = vadd.s32 %v118, 3
    %v123 = vand.u32 %v122, 3
    %vm124 = vcmp.lt.s32.totalorder %v123, 2
    %vm125 = vcmp.eq.s32.totalorder %v123, 0
    %v126 = vxor.u32 %v120, 2147483648
    %v127 = vsel %vm125, %v119, %v126
    %vm128 = vcmp.eq.s32.totalorder %v123, 2
    %v129 = vxor.u32 %v119, 2147483648
    %v130 = vsel %vm128, %v129, %v120
    %v131 = vsel %vm124, %v127, %v130
    %v132 = vsel %vm121, nan, %v131
    %v133 = vand.u32 2147483647, %v28
    %vm134 = vcmp.le.f32.partialorder %v133, 0.7853982
    %vm135 = vcmp.lt.s32.totalorder %v28, 0
    %v136 = vand.u32 %v28, 2139095040
    %v137 = vshrl.u32 %v136, 23
    %v138 = vsub.s32 %v137, 127
    %v139 = vand.u32 2147483647, %v28
    %v140 = vand.u32 %v139, 8388607
    %v141 = vor.u32 %v140, 8388608
    %v142 = vsub.s32 0, %v141
    %v143 = vadd.s32 %v138, 1
    %vm144 = vcmp.gt.s32.totalorder %v143, 0
    %v145 = vsel %vm144, %v143, 0
    %v146 = vshrl.u32 %v145, 5
    %v147 = vand.u32 %v145, 31
    %v148 = vsub.s32 32, %v147
    %v149 = vshrl.u32 683565275, %v148
    %v150 = vshll.u32 683565275, %v147
    %v151 = vshrl.u32 2475754826, %v148
    %v152 = vor.u32 %v150, %v151
    %v153 = vshll.u32 2475754826, %v147
    %v154 = vshrl.u32 2131351028, %v148
    %v155 = vor.u32 %v153, %v154
    %v156 = vshll.u32 2131351028, %v147
    %v157 = vshrl.u32 2102212464, %v148
    %v158 = vor.u32 %v156, %v157
    %v159 = vshll.u32 2102212464, %v147
    %v160 = vshrl.u32 920167782, %v148
    %v161 = vor.u32 %v159, %v160
    %v162 = vshll.u32 920167782, %v147
    %v163 = vshrl.u32 1326507024, %v148
    %v164 = vor.u32 %v162, %v163
    %vm165 = vcmp.lt.s32.totalorder %v146, 1
    %vm166 = vcmp.lt.s32.totalorder %v146, 2
    %vm167 = vcmp.lt.s32.totalorder %v146, 3
    %vm168 = vcmp.lt.s32.totalorder %v146, 4
    %v169 = vsel %vm165, %v149, %v152
    %v170 = vsel %vm168, %v158, 2102212464
    %v171 = vsel %vm167, %v155, %v170
    %v172 = vsel %vm166, %v169, %v171
    %v173 = vsel %vm165, %v152, %v155
    %v174 = vsel %vm168, %v161, 920167782
    %v175 = vsel %vm167, %v158, %v174
    %v176 = vsel %vm166, %v173, %v175
    %v177 = vsel %vm165, %v155, %v158
    %v178 = vsel %vm168, %v164, 1326507024
    %v179 = vsel %vm167, %v161, %v178
    %v180 = vsel %vm166, %v177, %v179
    %v181 = vshll.u32 %v141, 8
    %v182 = vmul.u32.u64.compose %v181, %v180
    %v183 = vextract.low.u32 %v182
    %v184 = vextract.high.u32 %v182
    %v185 = vmul.u32.u64.compose %v181, %v176
    %v186 = vextract.low.u32 %v185
    %v187 = vextract.high.u32 %v185
    %v188 = vmul.u32 %v181, %v172
    %v189 = vadd.s32 %v184, %v186
    %vm190 = vc.u32 %v184, %v186
    %v191 = vadd.s32 %v187, 1
    %v192 = vsel %vm190, %v191, %v187
    %v193 = vadd.s32 %v188, %v192
    %v194 = vadd.s32 %v193, 536870912
    %v195 = vshrl.u32 %v194, 30
    %v196 = vshll.u32 %v195, 30
    %v197 = vsub.s32 %v193, %v196
    %vm198 = vcmp.lt.s32.totalorder %v197, 0
    %v199 = vsub.s32 0, %v197
    %v200 = vsel %vm198, %v199, %v197
    %v201 = vclz %v200
    %v202 = vsub.s32 %v201, 2
    %vm203 = vcmp.gt.s32.totalorder 0, %v202
    %v204 = vsel %vm203, 0, %v202
    %v205 = vsub.s32 32, %v204
    %v206 = vshll.u32 %v197, %v204
    %v207 = vshrl.u32 %v189, %v205
    %v208 = vor.u32 %v206, %v207
    %v209 = vsub.s32 4294967266, %v204
    %v210 = vadd.s32 %v209, 127
    %v211 = vshll.u32 %v210, 23
    %v212 = vor.u32 4788187, %v211
    %v213 = vand.u32 2147483647, %v212
    %v215 = vcvt.s32.f32 %v208
    %v216 = vmul.f32 %v215, %v213
    %v217 = vxor.u32 %v216, 2147483648
    %v218 = vsel %vm135, %v217, %v216
    %v219 = vsub.s32 4, %v195
    %v220 = vsel %vm135, %v219, %v195
    %v221 = vsel %vm134, %v28, %v218
    %v222 = vsel %vm134, 0, %v220
    %v223 = vcosq.f32.pop %v221
    %v224 = vsinq.f32.pop %v221
    %vm225 = vweird.f32 %v28
    %v226 = vadd.s32 %v222, 3
    %v227 = vand.u32 %v226, 3
    %vm228 = vcmp.lt.s32.totalorder %v227, 2
    %vm229 = vcmp.eq.s32.totalorder %v227, 0
    %v230 = vxor.u32 %v224, 2147483648
    %v231 = vsel %vm229, %v223, %v230
    %vm232 = vcmp.eq.s32.totalorder %v227, 2
    %v233 = vxor.u32 %v223, 2147483648
    %v234 = vsel %vm232, %v233, %v224
    %v235 = vsel %vm228, %v231, %v234
    %v236 = vsel %vm225, nan, %v235
    %v237 = vand.u32 2147483647, %v27
    %vm238 = vcmp.le.f32.partialorder %v237, 0.7853982
    %vm239 = vcmp.lt.s32.totalorder %v27, 0
    %v240 = vand.u32 %v27, 2139095040
    %v241 = vshrl.u32 %v240, 23
    %v242 = vsub.s32 %v241, 127
    %v243 = vand.u32 2147483647, %v27
    %v244 = vand.u32 %v243, 8388607
    %v245 = vor.u32 %v244, 8388608
    %v246 = vsub.s32 0, %v245
    %v247 = vadd.s32 %v242, 1
    %vm248 = vcmp.gt.s32.totalorder %v247, 0
    %v249 = vsel %vm248, %v247, 0
    %v250 = vshrl.u32 %v249, 5
    %v251 = vand.u32 %v249, 31
    %v252 = vsub.s32 32, %v251
    %v253 = vshrl.u32 683565275, %v252
    %v254 = vshll.u32 683565275, %v251
    %v255 = vshrl.u32 2475754826, %v252
    %v256 = vor.u32 %v254, %v255
    %v257 = vshll.u32 2475754826, %v251
    %v258 = vshrl.u32 2131351028, %v252
    %v259 = vor.u32 %v257, %v258
    %v260 = vshll.u32 2131351028, %v251
    %v261 = vshrl.u32 2102212464, %v252
    %v262 = vor.u32 %v260, %v261
    %v263 = vshll.u32 2102212464, %v251
    %v264 = vshrl.u32 920167782, %v252
    %v265 = vor.u32 %v263, %v264
    %v266 = vshll.u32 920167782, %v251
    %v267 = vshrl.u32 1326507024, %v252
    %v268 = vor.u32 %v266, %v267
    %vm269 = vcmp.lt.s32.totalorder %v250, 1
    %vm270 = vcmp.lt.s32.totalorder %v250, 2
    %vm271 = vcmp.lt.s32.totalorder %v250, 3
    %vm272 = vcmp.lt.s32.totalorder %v250, 4
    %v273 = vsel %vm269, %v253, %v256
    %v274 = vsel %vm272, %v262, 2102212464
    %v275 = vsel %vm271, %v259, %v274
    %v276 = vsel %vm270, %v273, %v275
    %v277 = vsel %vm269, %v256, %v259
    %v278 = vsel %vm272, %v265, 920167782
    %v279 = vsel %vm271, %v262, %v278
    %v280 = vsel %vm270, %v277, %v279
    %v281 = vsel %vm269, %v259, %v262
    %v282 = vsel %vm272, %v268, 1326507024
    %v283 = vsel %vm271, %v265, %v282
    %v284 = vsel %vm270, %v281, %v283
    %v285 = vshll.u32 %v245, 8
    %v286 = vmul.u32.u64.compose %v285, %v284
    %v287 = vextract.low.u32 %v286
    %v288 = vextract.high.u32 %v286
    %v289 = vmul.u32.u64.compose %v285, %v280
    %v290 = vextract.low.u32 %v289
    %v291 = vextract.high.u32 %v289
    %v292 = vmul.u32 %v285, %v276
    %v293 = vadd.s32 %v288, %v290
    %vm294 = vc.u32 %v288, %v290
    %v295 = vadd.s32 %v291, 1
    %v296 = vsel %vm294, %v295, %v291
    %v297 = vadd.s32 %v292, %v296
    %v298 = vadd.s32 %v297, 536870912
    %v299 = vshrl.u32 %v298, 30
    %v300 = vshll.u32 %v299, 30
    %v301 = vsub.s32 %v297, %v300
    %vm302 = vcmp.lt.s32.totalorder %v301, 0
    %v303 = vsub.s32 0, %v301
    %v304 = vsel %vm302, %v303, %v301
    %v305 = vclz %v304
    %v306 = vsub.s32 %v305, 2
    %vm307 = vcmp.gt.s32.totalorder 0, %v306
    %v308 = vsel %vm307, 0, %v306
    %v309 = vsub.s32 32, %v308
    %v310 = vshll.u32 %v301, %v308
    %v311 = vshrl.u32 %v293, %v309
    %v312 = vor.u32 %v310, %v311
    %v313 = vsub.s32 4294967266, %v308
    %v314 = vadd.s32 %v313, 127
    %v315 = vshll.u32 %v314, 23
    %v316 = vor.u32 4788187, %v315
    %v317 = vand.u32 2147483647, %v316
    %v319 = vcvt.s32.f32 %v312
    %v320 = vmul.f32 %v319, %v317
    %v321 = vxor.u32 %v320, 2147483648
    %v322 = vsel %vm239, %v321, %v320
    %v323 = vsub.s32 4, %v299
    %v324 = vsel %vm239, %v323, %v299
    %v325 = vsel %vm238, %v27, %v322
    %v326 = vsel %vm238, 0, %v324
    %v327 = vcosq.f32.pop %v325
    %v328 = vsinq.f32.pop %v325
    %vm329 = vweird.f32 %v27
    %v330 = vand.u32 %v326, 3
    %vm331 = vcmp.lt.s32.totalorder %v330, 2
    %vm332 = vcmp.eq.s32.totalorder %v330, 0
    %v333 = vxor.u32 %v328, 2147483648
    %v334 = vsel %vm332, %v327, %v333
    %vm335 = vcmp.eq.s32.totalorder %v330, 2
    %v336 = vxor.u32 %v327, 2147483648
    %v337 = vsel %vm335, %v336, %v328
    %v338 = vsel %vm331, %v334, %v337
    %v339 = vsel %vm329, nan, %v338
    %v340 = vand.u32 2147483647, %v28
    %vm341 = vcmp.le.f32.partialorder %v340, 0.7853982
    %vm342 = vcmp.lt.s32.totalorder %v28, 0
    %v343 = vand.u32 %v28, 2139095040
    %v344 = vshrl.u32 %v343, 23
    %v345 = vsub.s32 %v344, 127
    %v346 = vand.u32 2147483647, %v28
    %v347 = vand.u32 %v346, 8388607
    %v348 = vor.u32 %v347, 8388608
    %v349 = vsub.s32 0, %v348
    %v350 = vadd.s32 %v345, 1
    %vm351 = vcmp.gt.s32.totalorder %v350, 0
    %v352 = vsel %vm351, %v350, 0
    %v353 = vshrl.u32 %v352, 5
    %v354 = vand.u32 %v352, 31
    %v355 = vsub.s32 32, %v354
    %v356 = vshrl.u32 683565275, %v355
    %v357 = vshll.u32 683565275, %v354
    %v358 = vshrl.u32 2475754826, %v355
    %v359 = vor.u32 %v357, %v358
    %v360 = vshll.u32 2475754826, %v354
    %v361 = vshrl.u32 2131351028, %v355
    %v362 = vor.u32 %v360, %v361
    %v363 = vshll.u32 2131351028, %v354
    %v364 = vshrl.u32 2102212464, %v355
    %v365 = vor.u32 %v363, %v364
    %v366 = vshll.u32 2102212464, %v354
    %v367 = vshrl.u32 920167782, %v355
    %v368 = vor.u32 %v366, %v367
    %v369 = vshll.u32 920167782, %v354
    %v370 = vshrl.u32 1326507024, %v355
    %v371 = vor.u32 %v369, %v370
    %vm372 = vcmp.lt.s32.totalorder %v353, 1
    %vm373 = vcmp.lt.s32.totalorder %v353, 2
    %vm374 = vcmp.lt.s32.totalorder %v353, 3
    %vm375 = vcmp.lt.s32.totalorder %v353, 4
    %v376 = vsel %vm372, %v356, %v359
    %v377 = vsel %vm375, %v365, 2102212464
    %v378 = vsel %vm374, %v362, %v377
    %v379 = vsel %vm373, %v376, %v378
    %v380 = vsel %vm372, %v359, %v362
    %v381 = vsel %vm375, %v368, 920167782
    %v382 = vsel %vm374, %v365, %v381
    %v383 = vsel %vm373, %v380, %v382
    %v384 = vsel %vm372, %v362, %v365
    %v385 = vsel %vm375, %v371, 1326507024
    %v386 = vsel %vm374, %v368, %v385
    %v387 = vsel %vm373, %v384, %v386
    %v388 = vshll.u32 %v348, 8
    %v389 = vmul.u32.u64.compose %v388, %v387
    %v390 = vextract.low.u32 %v389
    %v391 = vextract.high.u32 %v389
    %v392 = vmul.u32.u64.compose %v388, %v383
    %v393 = vextract.low.u32 %v392
    %v394 = vextract.high.u32 %v392
    %v395 = vmul.u32 %v388, %v379
    %v396 = vadd.s32 %v391, %v393
    %vm397 = vc.u32 %v391, %v393
    %v398 = vadd.s32 %v394, 1
    %v399 = vsel %vm397, %v398, %v394
    %v400 = vadd.s32 %v395, %v399
    %v401 = vadd.s32 %v400, 536870912
    %v402 = vshrl.u32 %v401, 30
    %v403 = vshll.u32 %v402, 30
    %v404 = vsub.s32 %v400, %v403
    %vm405 = vcmp.lt.s32.totalorder %v404, 0
    %v406 = vsub.s32 0, %v404
    %v407 = vsel %vm405, %v406, %v404
    %v408 = vclz %v407
    %v409 = vsub.s32 %v408, 2
    %vm410 = vcmp.gt.s32.totalorder 0, %v409
    %v411 = vsel %vm410, 0, %v409
    %v412 = vsub.s32 32, %v411
    %v413 = vshll.u32 %v404, %v411
    %v414 = vshrl.u32 %v396, %v412
    %v415 = vor.u32 %v413, %v414
    %v416 = vsub.s32 4294967266, %v411
    %v417 = vadd.s32 %v416, 127
    %v418 = vshll.u32 %v417, 23
    %v419 = vor.u32 4788187, %v418
    %v420 = vand.u32 2147483647, %v419
    %v422 = vcvt.s32.f32 %v415
    %v423 = vmul.f32 %v422, %v420
    %v424 = vxor.u32 %v423, 2147483648
    %v425 = vsel %vm342, %v424, %v423
    %v426 = vsub.s32 4, %v402
    %v427 = vsel %vm342, %v426, %v402
    %v428 = vsel %vm341, %v28, %v425
    %v429 = vsel %vm341, 0, %v427
    %v430 = vcosq.f32.pop %v428
    %v431 = vsinq.f32.pop %v428
    %vm432 = vweird.f32 %v28
    %v433 = vand.u32 %v429, 3
    %vm434 = vcmp.lt.s32.totalorder %v433, 2
    %vm435 = vcmp.eq.s32.totalorder %v433, 0
    %v436 = vxor.u32 %v431, 2147483648
    %v437 = vsel %vm435, %v430, %v436
    %vm438 = vcmp.eq.s32.totalorder %v433, 2
    %v439 = vxor.u32 %v430, 2147483648
    %v440 = vsel %vm438, %v439, %v431
    %v441 = vsel %vm434, %v437, %v440
    %v442 = vsel %vm432, nan, %v441
    %s443 = scalar_lea.vmem [#allocation5], 16
    %444 = vst [vmem:[%s443] sm:$0xff] %v132
    %445 = vst [vmem:[%s443 + $0x8] sm:$0xff] %v236
    %s446 = scalar_lea.vmem [#allocation5], 80
    %447 = vst [vmem:[%s446] sm:$0xff] %v339
    %448 = vst [vmem:[%s446 + $0x8] sm:$0xff] %v442
    %v449 = vadd.f32 %v132, %v132
    %v450 = vadd.f32 %v236, %v236
    %v451 = vmul.f32 %v449, %v339
    %v452 = vmul.f32 %v450, %v442
    %v453 = vmul.f32 %v449, %v132
    %v454 = vmul.f32 %v450, %v236
    %v455 = vsub.f32 1.0, %v453
    %v456 = vsub.f32 1.0, %v454
    %s457 = scalar_lea.vmem [#allocation5], 32
    %458 = vst [vmem:[%s457] sm:$0xff] %v451
    %459 = vst [vmem:[%s457 + $0x8] sm:$0xff] %v452
    %s460 = scalar_lea.vmem [#allocation5], 96
    %461 = vst [vmem:[%s460] sm:$0xff] %v455
    %462 = vst [vmem:[%s460 + $0x8] sm:$0xff] %v456
    %v463 = vadd.f32 %v451, %v451
    %v464 = vadd.f32 %v452, %v452
    %v465 = vmul.f32 %v463, %v455
    %v466 = vmul.f32 %v464, %v456
    %v467 = vmul.f32 %v463, %v451
    %v468 = vmul.f32 %v464, %v452
    %v469 = vsub.f32 1.0, %v467
    %v470 = vsub.f32 1.0, %v468
    %s471 = scalar_lea.vmem [#allocation5], 48
    %472 = vst [vmem:[%s471] sm:$0xff] %v465
    %473 = vst [vmem:[%s471 + $0x8] sm:$0xff] %v466
    %s474 = scalar_lea.vmem [#allocation5], 112
    %475 = vst [vmem:[%s474] sm:$0xff] %v469
    %476 = vst [vmem:[%s474 + $0x8] sm:$0xff] %v470
    %v477 = vadd.f32 %v465, %v465
    %v478 = vadd.f32 %v466, %v466
    %v479 = vmul.f32 %v477, %v469
    %v480 = vmul.f32 %v478, %v470
    %v481 = vmul.f32 %v477, %v465
    %v482 = vmul.f32 %v478, %v466
    %v483 = vsub.f32 1.0, %v481
    %v484 = vsub.f32 1.0, %v482
    %s485 = scalar_lea.vmem [#allocation5], 64
    %486 = vst [vmem:[%s485] sm:$0xff] %v479
    %487 = vst [vmem:[%s485 + $0x8] sm:$0xff] %v480
    %s488 = scalar_lea.vmem [#allocation5], 128
    %489 = vst [vmem:[%s488] sm:$0xff] %v483
    %490 = vst [vmem:[%s488 + $0x8] sm:$0xff] %v484
    // Predicated region
    $region10: #{tpu_custom_call.1} parent=1 // pred_check
      _
    $region11: #{tpu_custom_call.1} parent=1 // pred_check_branch
      %492 = sbr.rel (0) target = $region13
    $region12: #{tpu_custom_call.1} parent=1 // pred_region
      %s494 = ssub.s32 2304, 2304
      %495 = vsyncadd [#allocation4], %s494
      %s496 = sshll.u32 [#allocation5], 4
      %s497 = int_to_ptr.vmem [resolvable:$true] %s496
      %502 = dma.vmem_to_hbm [thread:$0]  %s497, 2304, %s1, [#allocation4], 128, 128, 8
    $region13: #{tpu_custom_call.1} parent=1 // pred_fallthru
      _
    // Predicated region
    $region14: #{tpu_custom_call.1} parent=1 // pred_check
      _
    $region15: #{tpu_custom_call.1} parent=1 // pred_check_branch
      %504 = sbr.rel (0) target = $region17
    $region16: #{tpu_custom_call.1} parent=1 // pred_region
      %505 = dma.done [#allocation4], 2304
    $region17: #{tpu_custom_call.1} parent=1 // pred_fallthru
      _
    %506 = vsyncpa [#allocation3], 1
    %507 = vsyncpa [#allocation4], 1

</llo_original>
